<compile_context>
chip_gen: v7x
topology: tpu7x:2x2x1
jax: 0.10.0
libtpu: 0.0.40
codegen_flags: <defaults>
</compile_context>

<pallas_src>
import functools

import jax
import jax.numpy as jnp
from jax.experimental import pallas as pl
from jax.experimental.pallas import tpu as pltpu

LEAK = 0.2
EPS = 1e-5
LANE = 128
SUBLANE = 8
VMEM_LIMIT = 32 * 1024 * 1024   # safe on v5e/v6e/v7x, ample for these tiles


def _round_up(a, b):
    return (a + b - 1) // b * b


# ----------------------- pass 1 (tiled, multi-tile path) ---------------------
def conv_stats_kernel(p_ref, w_ref, y_ref, stats_ref):
    # p_ref:     (TR, K)     im2col patches (pre-activation); padded rows are 0
    # w_ref:     (K, Cp)     reshaped conv weights (VMEM-resident across grid)
    # y_ref:     (TR, Cp)    conv output tile (f32, or compute dtype if set)
    # stats_ref: (1, 2, Cp)  per-tile [sum(y), sum(y*y)] partials, f32
    p = p_ref[...]
    p = jnp.where(p >= 0, p, LEAK * p)                        # LeakyReLU(0.2)
    y = jnp.dot(p, w_ref[...], preferred_element_type=jnp.float32)
    y_ref[...] = y.astype(y_ref.dtype)

    # Per-channel partial sums via an MXU ones-row matmul (keeps the reduction
    # off the XLU/VPU; zero-padded rows contribute exactly 0 to the stats).
    ones_row = jnp.ones((1, y.shape[0]), jnp.float32)
    s1 = jnp.dot(ones_row, y, preferred_element_type=jnp.float32)        # (1, Cp)
    s2 = jnp.dot(ones_row, y * y, preferred_element_type=jnp.float32)    # (1, Cp)
    stats_ref[...] = jnp.concatenate([s1, s2], axis=0)[None]             # (1, 2, Cp)


# ----------------------- pass 2 (tiled, multi-tile path) ---------------------
def bn_apply_kernel(y_ref, scale_ref, shift_ref, o_ref):
    # y_ref: (TR, Cp); scale/shift: (1, Cp) resident f32; o_ref: (TR, Cp)
    y = y_ref[...].astype(jnp.float32)
    o_ref[...] = (y * scale_ref[...] + shift_ref[...]).astype(o_ref.dtype)


# --------------------- fused single-tile path (no HBM y) ---------------------
def fused_kernel(p_ref, w_ref, gamma_ref, beta_ref, o_ref, *, n_rows):
    # Whole problem fits in one VMEM tile: LeakyReLU -> conv -> global BN stats
    # -> normalize, all in-register / VMEM.  Zero-padded rows contribute 0 to
    # the stat sums; dividing by the true row count `n_rows` keeps stats exact.
    p = p_ref[...]
    p = jnp.where(p >= 0, p, LEAK * p)
    y = jnp.dot(p, w_ref[...], preferred_element_type=jnp.float32)

    ones_row = jnp.ones((1, y.shape[0]), jnp.float32)
    s1 = jnp.dot(ones_row, y, preferred_element_type=jnp.float32)        # (1, Cp)
    s2 = jnp.dot(ones_row, y * y, preferred_element_type=jnp.float32)    # (1, Cp)
    inv_n = jnp.float32(1.0 / n_rows)
    mean = s1 * inv_n
    var = jnp.maximum(s2 * inv_n - mean * mean, 0.0)                     # biased
    inv = jax.lax.rsqrt(var + EPS)                                       # EUP
    scale = gamma_ref[...] * inv
    shift = beta_ref[...] - mean * scale
    o_ref[...] = (y * scale + shift).astype(o_ref.dtype)


def im2col_nchw(x_nchw, kernel_size, stride, padding):
    """Plain-JAX glue: NCHW -> (N*Ho*Wo, KH*KW*Cin) patch matrix (cols: kh,kw,cin)."""
    # TODO(synk): build patches inside the kernel (per-kh shifted matmuls or a
    # manual DMA gather from the padded NHWC input) to cut the KH*KW=16x HBM
    # duplication of this materialized im2col matrix.
    n, c, h, w = x_nchw.shape
    ho = (h + 2 * padding - kernel_size) // stride + 1
    wo = (w + 2 * padding - kernel_size) // stride + 1
    x = jnp.transpose(x_nchw, (0, 2, 3, 1))                   # NHWC
    x = jnp.pad(x, ((0, 0), (padding, padding), (padding, padding), (0, 0)))
    cols = []
    for kh in range(kernel_size):
        for kw in range(kernel_size):
            cols.append(x[:, kh:kh + stride * ho:stride, kw:kw + stride * wo:stride, :])
    patches = jnp.stack(cols, axis=3)                         # (N, Ho, Wo, KH*KW, Cin)
    return patches.reshape(n * ho * wo, kernel_size * kernel_size * c), (n, ho, wo)


def downsample_forward(x_nchw, w_oihw, gamma, beta, kernel_size=4, stride=2,
                       padding=1, block_rows=512, compute_dtype=None):
    cout, cin, kh, kw = w_oihw.shape
    out_dtype = x_nchw.dtype

    patches, (n, ho, wo) = im2col_nchw(x_nchw, kernel_size, stride, padding)
    r, k = patches.shape

    # OIHW -> (KH, KW, Cin, Cout) -> (KH*KW*Cin, Cout), matching patch column order.
    w_mat = jnp.transpose(w_oihw, (2, 3, 1, 0)).reshape(k, cout)

    # Lane-dense output channels (multiple of 128) -> unmasked vector stores.
    cp = _round_up(cout, LANE)
    w_mat = jnp.pad(w_mat, ((0, 0), (0, cp - cout)))

    # Row tiling: TR rows per grid step; rows zero-padded (zero patch rows give
    # zero conv output, so they do not perturb the global BN statistics).
    tr = _round_up(min(block_rows, _round_up(r, SUBLANE)), SUBLANE)
    num_tiles = pl.cdiv(r, tr)
    r_pad = num_tiles * tr
    patches = jnp.pad(patches, ((0, r_pad - r), (0, 0)))

    if compute_dtype is not None:
        patches = patches.astype(compute_dtype)
        w_mat = w_mat.astype(compute_dtype)
    y_store_dtype = jnp.float32 if compute_dtype is None else compute_dtype

    gamma_p = jnp.pad(gamma.astype(jnp.float32), (0, cp - cout)).reshape(1, cp)
    beta_p = jnp.pad(beta.astype(jnp.float32), (0, cp - cout)).reshape(1, cp)

    cparams = pltpu.CompilerParams(
        dimension_semantics=("parallel",),      # shard grid across TCs (v7x megacore)
        vmem_limit_bytes=VMEM_LIMIT,
    )

    if num_tiles == 1:
        # ---- Fused path: everything in one VMEM tile, no HBM intermediate ----
        out_flat = pl.pallas_call(
            functools.partial(fused_kernel, n_rows=r),
            out_shape=jax.ShapeDtypeStruct((r_pad, cp), out_dtype),
            grid=(1,),
            in_specs=[
                pl.BlockSpec((r_pad, k), lambda i: (0, 0)),
                pl.BlockSpec((k, cp), lambda i: (0, 0)),
                pl.BlockSpec((1, cp), lambda i: (0, 0)),
                pl.BlockSpec((1, cp), lambda i: (0, 0)),
            ],
            out_specs=pl.BlockSpec((r_pad, cp), lambda i: (0, 0)),
            compiler_params=cparams,
        )(patches, w_mat, gamma_p, beta_p)
    else:
        # ---- Pass 1: LeakyReLU + conv matmul + per-tile BN partial sums ------
        y, stats = pl.pallas_call(
            conv_stats_kernel,
            out_shape=(
                jax.ShapeDtypeStruct((r_pad, cp), y_store_dtype),
                jax.ShapeDtypeStruct((num_tiles, 2, cp), jnp.float32),
            ),
            grid=(num_tiles,),
            in_specs=[
                pl.BlockSpec((tr, k), lambda i: (i, 0)),
                pl.BlockSpec((k, cp), lambda i: (0, 0)),      # resident weights
            ],
            out_specs=(
                pl.BlockSpec((tr, cp), lambda i: (i, 0)),
                pl.BlockSpec((1, 2, cp), lambda i: (i, 0, 0)),
            ),
            compiler_params=cparams,
        )(patches, w_mat)

        # ---- Global BN statistics (exact, f32) from tiny per-tile partials ---
        tot = jnp.sum(stats, axis=0)                          # (2, Cp)
        mean = tot[0] / jnp.float32(r)
        var = jnp.maximum(tot[1] / jnp.float32(r) - mean * mean, 0.0)  # biased
        inv = jax.lax.rsqrt(var + EPS)
        scale = gamma_p[0] * inv
        shift = beta_p[0] - mean * scale

        # ---- Pass 2: y * scale + shift (tiled; scale/shift VMEM-resident) ----
        out_flat = pl.pallas_call(
            bn_apply_kernel,
            out_shape=jax.ShapeDtypeStruct((r_pad, cp), out_dtype),
            grid=(num_tiles,),
            in_specs=[
                pl.BlockSpec((tr, cp), lambda i: (i, 0)),
                pl.BlockSpec((1, cp), lambda i: (0, 0)),
                pl.BlockSpec((1, cp), lambda i: (0, 0)),
            ],
            out_specs=pl.BlockSpec((tr, cp), lambda i: (i, 0)),
            compiler_params=cparams,
        )(out_flat := y, scale.reshape(1, cp), shift.reshape(1, cp))

    # (N*Ho*Wo, Cout) -> NCHW
    out = out_flat[:r, :cout].reshape(n, ho, wo, cout)
    return jnp.transpose(out, (0, 3, 1, 2))


def reference_forward(x_nchw, w_oihw, gamma, beta, stride=2, padding=1):
    """Pure-JAX reference matching PyTorch semantics (for a sanity check)."""
    y = jnp.where(x_nchw >= 0, x_nchw, LEAK * x_nchw)
    y = jax.lax.conv_general_dilated(
        y.astype(jnp.float32), w_oihw.astype(jnp.float32),
        window_strides=(stride, stride),
        padding=((padding, padding), (padding, padding)),
        dimension_numbers=("NCHW", "OIHW", "NCHW"))
    mean = jnp.mean(y, axis=(0, 2, 3), keepdims=True)
    var = jnp.mean((y - mean) ** 2, axis=(0, 2, 3), keepdims=True)
    return (y - mean) * jax.lax.rsqrt(var + EPS) * gamma.reshape(1, -1, 1, 1) \
        + beta.reshape(1, -1, 1, 1)


if __name__ == "__main__":
    # Small shapes consistent with the module: in_dim=4, out_dim=8, 16x16 spatial.
    N, CIN, COUT, H, W = 2, 4, 8, 16, 16
    key = jax.random.PRNGKey(0)
    kx, kw = jax.random.split(key)
    x = jax.random.normal(kx, (N, CIN, H, W), dtype=jnp.float32)
    w = jax.random.normal(kw, (COUT, CIN, 4, 4), dtype=jnp.float32) * 0.1
    gamma = jnp.ones((COUT,), dtype=jnp.float32)   # PyTorch BatchNorm2d default init
    beta = jnp.zeros((COUT,), dtype=jnp.float32)

    ref = reference_forward(x, w, gamma, beta)

    # 1) Fused single-tile path (default block_rows keeps R=128 rows in one tile).
    out_fused = jax.block_until_ready(downsample_forward(x, w, gamma, beta))
    assert out_fused.shape == (N, COUT, H // 2, W // 2)
    assert jnp.allclose(out_fused, ref, atol=2e-3, rtol=2e-3), "fused f32 mismatch"

    # 2) Tiled two-pass path (block_rows=64 forces a multi-tile grid so the
    #    cross-tile global BN accumulation path is exercised).
    out_tiled = jax.block_until_ready(
        downsample_forward(x, w, gamma, beta, block_rows=64))
    assert jnp.allclose(out_tiled, ref, atol=2e-3, rtol=2e-3), "tiled f32 mismatch"

    # 3) bf16 feed (halved HBM traffic incl. the inter-pass intermediate) with
    #    f32 MXU accumulation + f32 BN stats, on the tiled path.
    out_bf16 = jax.block_until_ready(
        downsample_forward(x, w, gamma, beta, block_rows=64,
                           compute_dtype=jnp.bfloat16))
    assert jnp.allclose(out_bf16, ref, atol=5e-2, rtol=5e-2), "bf16 mismatch"

    print("KERNEL_OK")
</pallas_src>

<mosaic_0001>
module attributes {stable_mosaic.version = 11 : i64} {
  func.func @fused_kernel(%arg0: i32, %arg1: memref<128x64xf32, #tpu.memory_space<vmem>>, %arg2: memref<64x128xf32, #tpu.memory_space<vmem>>, %arg3: memref<1x128xf32, #tpu.memory_space<vmem>>, %arg4: memref<1x128xf32, #tpu.memory_space<vmem>>, %arg5: memref<128x128xf32, #tpu.memory_space<vmem>>) attributes {dimension_semantics = [#tpu.dimension_semantics<parallel>], iteration_bounds = array<i64: 1>, scalar_prefetch = 0 : i64, scratch_operands = 0 : i64, tpu.core_type = #tpu.core_type<tc>, window_params = [{pipeline_mode = #tpu.pipeline_mode<synchronous>, transform_indices = @transform_0, window_bounds = array<i64: 128, 64>}, {pipeline_mode = #tpu.pipeline_mode<synchronous>, transform_indices = @transform_1, window_bounds = array<i64: 64, 128>}, {pipeline_mode = #tpu.pipeline_mode<synchronous>, transform_indices = @transform_2, window_bounds = array<i64: 1, 128>}, {pipeline_mode = #tpu.pipeline_mode<synchronous>, transform_indices = @transform_3, window_bounds = array<i64: 1, 128>}, {pipeline_mode = #tpu.pipeline_mode<synchronous>, transform_indices = @transform_4, window_bounds = array<i64: 128, 128>}]} {
    %c0 = arith.constant 0 : index
    %c0_0 = arith.constant 0 : index
    %0 = vector.load %arg1[%c0, %c0_0] : memref<128x64xf32, #tpu.memory_space<vmem>>, vector<128x64xf32>
    %cst = arith.constant 0.000000e+00 : f32
    %1 = vector.broadcast %cst : f32 to vector<128x64xf32>
    %2 = arith.cmpf oge, %0, %1 : vector<128x64xf32>
    %cst_1 = arith.constant 2.000000e-01 : f32
    %3 = vector.broadcast %cst_1 : f32 to vector<128x64xf32>
    %4 = arith.mulf %3, %0 : vector<128x64xf32>
    %5 = arith.select %2, %0, %4 : vector<128x64xi1>, vector<128x64xf32>
    %c0_2 = arith.constant 0 : index
    %c0_3 = arith.constant 0 : index
    %6 = vector.load %arg2[%c0_2, %c0_3] : memref<64x128xf32, #tpu.memory_space<vmem>>, vector<64x128xf32>
    %cst_4 = arith.constant dense<0.000000e+00> : vector<128x128xf32>
    %7 = tpu.matmul %5, %6, %cst_4 {dimension_numbers = #tpu.dot_dimension_numbers<[1], [0], [0], [1], [0, 0, 1, 1], [], []>} : vector<128x64xf32>, vector<64x128xf32>, vector<128x128xf32> -> vector<128x128xf32>
    %cst_5 = arith.constant 1.000000e+00 : f32
    %8 = vector.broadcast %cst_5 : f32 to vector<1x128xf32>
    %cst_6 = arith.constant dense<0.000000e+00> : vector<1x128xf32>
    %9 = tpu.matmul %8, %7, %cst_6 {dimension_numbers = #tpu.dot_dimension_numbers<[1], [0], [0], [1], [0, 0, 1, 1], [], []>} : vector<1x128xf32>, vector<128x128xf32>, vector<1x128xf32> -> vector<1x128xf32>
    %10 = arith.mulf %7, %7 : vector<128x128xf32>
    %cst_7 = arith.constant dense<0.000000e+00> : vector<1x128xf32>
    %11 = tpu.matmul %8, %10, %cst_7 {dimension_numbers = #tpu.dot_dimension_numbers<[1], [0], [0], [1], [0, 0, 1, 1], [], []>} : vector<1x128xf32>, vector<128x128xf32>, vector<1x128xf32> -> vector<1x128xf32>
    %cst_8 = arith.constant 7.812500e-03 : f32
    %12 = vector.broadcast %cst_8 : f32 to vector<1x128xf32>
    %13 = arith.mulf %9, %12 : vector<1x128xf32>
    %cst_9 = arith.constant 7.812500e-03 : f32
    %14 = vector.broadcast %cst_9 : f32 to vector<1x128xf32>
    %15 = arith.mulf %11, %14 : vector<1x128xf32>
    %16 = arith.mulf %13, %13 : vector<1x128xf32>
    %17 = arith.subf %15, %16 : vector<1x128xf32>
    %cst_10 = arith.constant 0.000000e+00 : f32
    %18 = vector.broadcast %cst_10 : f32 to vector<1x128xf32>
    %19 = arith.maximumf %17, %18 : vector<1x128xf32>
    %cst_11 = arith.constant 9.99999974E-6 : f32
    %20 = vector.broadcast %cst_11 : f32 to vector<1x128xf32>
    %21 = arith.addf %19, %20 : vector<1x128xf32>
    %22 = math.rsqrt %21 : vector<1x128xf32>
    %c0_12 = arith.constant 0 : index
    %c0_13 = arith.constant 0 : index
    %23 = vector.load %arg3[%c0_12, %c0_13] : memref<1x128xf32, #tpu.memory_space<vmem>>, vector<1x128xf32>
    %24 = arith.mulf %23, %22 : vector<1x128xf32>
    %c0_14 = arith.constant 0 : index
    %c0_15 = arith.constant 0 : index
    %25 = vector.load %arg4[%c0_14, %c0_15] : memref<1x128xf32, #tpu.memory_space<vmem>>, vector<1x128xf32>
    %26 = arith.mulf %13, %24 : vector<1x128xf32>
    %27 = arith.subf %25, %26 : vector<1x128xf32>
    %28 = vector.broadcast %24 : vector<1x128xf32> to vector<128x128xf32>
    %29 = arith.mulf %7, %28 : vector<128x128xf32>
    %30 = vector.broadcast %27 : vector<1x128xf32> to vector<128x128xf32>
    %31 = arith.addf %29, %30 : vector<128x128xf32>
    %c0_16 = arith.constant 0 : index
    %c0_17 = arith.constant 0 : index
    %32 = vector.load %arg5[%c0_16, %c0_17] : memref<128x128xf32, #tpu.memory_space<vmem>>, vector<128x128xf32>
    tpu.vector_store %arg5[%c0_16, %c0_17], %31 {strides = array<i32>} : memref<128x128xf32, #tpu.memory_space<vmem>>, vector<128x128xf32>,
    return
  }
  func.func @transform_0(%arg0: i32) -> (i32, i32) {
    %c0_i32 = arith.constant 0 : i32
    %c0_i32_0 = arith.constant 0 : i32
    %c0_i32_1 = arith.constant 0 : i32
    return %c0_i32, %c0_i32_0 : i32, i32
  }
  func.func @transform_1(%arg0: i32) -> (i32, i32) {
    %c0_i32 = arith.constant 0 : i32
    %c0_i32_0 = arith.constant 0 : i32
    %c0_i32_1 = arith.constant 0 : i32
    return %c0_i32, %c0_i32_0 : i32, i32
  }
  func.func @transform_2(%arg0: i32) -> (i32, i32) {
    %c0_i32 = arith.constant 0 : i32
    %c0_i32_0 = arith.constant 0 : i32
    %c0_i32_1 = arith.constant 0 : i32
    return %c0_i32, %c0_i32_0 : i32, i32
  }
  func.func @transform_3(%arg0: i32) -> (i32, i32) {
    %c0_i32 = arith.constant 0 : i32
    %c0_i32_0 = arith.constant 0 : i32
    %c0_i32_1 = arith.constant 0 : i32
    return %c0_i32, %c0_i32_0 : i32, i32
  }
  func.func @transform_4(%arg0: i32) -> (i32, i32) {
    %c0_i32 = arith.constant 0 : i32
    %c0_i32_0 = arith.constant 0 : i32
    %c0_i32_1 = arith.constant 0 : i32
    return %c0_i32, %c0_i32_0 : i32, i32
  }
}

</mosaic_0001>

<llo_original>
// kernel: tpu_custom_call.1
$region0: #{tpu_custom_call.1}
  #allocation0 [shape = 'u32[]', space=smem, size = 0x4, offset = 0x4, fixed_abs, tag = 'smem constant byte address 0x4 - core index']
  #allocation1 [shape = 'u32[144,128]{1,0:T(1,128)}', space=vmem, size = 0x12000, scoped, tag = 'internal scratch']
  %s0 = inlined_call_operand.vmem [shape: f32[128,64], index: 0, kind: input, shape index: {}]
  %s1 = inlined_call_operand.vmem [shape: f32[64,128], index: 1, kind: input, shape index: {}]
  %s2 = inlined_call_operand.vmem [shape: f32[1,128], index: 2, kind: input, shape index: {}]
  %s3 = inlined_call_operand.vmem [shape: f32[1,128], index: 3, kind: input, shape index: {}]
  %s4 = inlined_call_operand.hbm [shape: f32[128,128], index: 4, kind: output, shape index: {}]
  %s5 = sld [smem:[#allocation0]]
  $region26: #{tpu_custom_call.1} parent=0
    _
  %s7 = ssub.s32 1, %s5
  %s8 = scalar_select 0, %s7, %s5
  $region1: #{tpu_custom_call.1} parent=0
    #allocation2 [shape = 'u8[65536]{0}', space=vmem, size = 0x10000, scoped, tag = 'output window, operand 0, single buffered']
    #allocation3 [shape = 's32[1]{0}', space=sflag, size = 0x4, scoped, tag = 'scoped memory for tpu_custom_call.1']
    %9 = vsyncpa [#allocation3], 0
    // Predicated region
    $region2: #{tpu_custom_call.1} parent=1 // pred_check
      _
    $region3: #{tpu_custom_call.1} parent=1 // pred_check_branch
      %11 = sbr.rel (0) target = $region5
    $region4: #{tpu_custom_call.1} parent=1 // pred_region
      _
    $region5: #{tpu_custom_call.1} parent=1 // pred_fallthru
      _
    // Predicated region
    $region6: #{tpu_custom_call.1} parent=1 // pred_check
      _
    $region7: #{tpu_custom_call.1} parent=1 // pred_check_branch
      %13 = sbr.rel (0) target = $region9
    $region8: #{tpu_custom_call.1} parent=1 // pred_region
      _
    $region9: #{tpu_custom_call.1} parent=1 // pred_fallthru
      _
    // Predicated region
    $region10: #{tpu_custom_call.1} parent=1 // pred_check
      _
    $region11: #{tpu_custom_call.1} parent=1 // pred_check_branch
      %15 = sbr.rel (0) target = $region13
    $region12: #{tpu_custom_call.1} parent=1 // pred_region
      _
    $region13: #{tpu_custom_call.1} parent=1 // pred_fallthru
      _
    // Predicated region
    $region14: #{tpu_custom_call.1} parent=1 // pred_check
      _
    $region15: #{tpu_custom_call.1} parent=1 // pred_check_branch
      %17 = sbr.rel (0) target = $region17
    $region16: #{tpu_custom_call.1} parent=1 // pred_region
      _
    $region17: #{tpu_custom_call.1} parent=1 // pred_fallthru
      _
    %v18 = vld [vmem:[%s0] sm:$0xff]
    %v19 = vld [vmem:[%s0 + $0x8] sm:$0xff]
    %v20 = vld [vmem:[%s0 + $0x10] sm:$0xff]
    %v21 = vld [vmem:[%s0 + $0x18] sm:$0xff]
    %v22 = vld [vmem:[%s0 + $0x20] sm:$0xff]
    %v23 = vld [vmem:[%s0 + $0x28] sm:$0xff]
    %v24 = vld [vmem:[%s0 + $0x30] sm:$0xff]
    %v25 = vld [vmem:[%s0 + $0x38] sm:$0xff]
    %v26 = vld [vmem:[%s0 + $0x40] sm:$0xff]
    %v27 = vld [vmem:[%s0 + $0x48] sm:$0xff]
    %v28 = vld [vmem:[%s0 + $0x50] sm:$0xff]
    %v29 = vld [vmem:[%s0 + $0x58] sm:$0xff]
    %v30 = vld [vmem:[%s0 + $0x60] sm:$0xff]
    %v31 = vld [vmem:[%s0 + $0x68] sm:$0xff]
    %v32 = vld [vmem:[%s0 + $0x70] sm:$0xff]
    %v33 = vld [vmem:[%s0 + $0x78] sm:$0xff]
    %vm34 = vcmp.ge.f32.partialorder %v18, 0.0
    %vm35 = vcmp.ge.f32.partialorder %v19, 0.0
    %vm36 = vcmp.ge.f32.partialorder %v20, 0.0
    %vm37 = vcmp.ge.f32.partialorder %v21, 0.0
    %vm38 = vcmp.ge.f32.partialorder %v22, 0.0
    %vm39 = vcmp.ge.f32.partialorder %v23, 0.0
    %vm40 = vcmp.ge.f32.partialorder %v24, 0.0
    %vm41 = vcmp.ge.f32.partialorder %v25, 0.0
    %vm42 = vcmp.ge.f32.partialorder %v26, 0.0
    %vm43 = vcmp.ge.f32.partialorder %v27, 0.0
    %vm44 = vcmp.ge.f32.partialorder %v28, 0.0
    %vm45 = vcmp.ge.f32.partialorder %v29, 0.0
    %vm46 = vcmp.ge.f32.partialorder %v30, 0.0
    %vm47 = vcmp.ge.f32.partialorder %v31, 0.0
    %vm48 = vcmp.ge.f32.partialorder %v32, 0.0
    %vm49 = vcmp.ge.f32.partialorder %v33, 0.0
    %v50 = vmul.f32 %v18, 0.2
    %v51 = vmul.f32 %v19, 0.2
    %v52 = vmul.f32 %v20, 0.2
    %v53 = vmul.f32 %v21, 0.2
    %v54 = vmul.f32 %v22, 0.2
    %v55 = vmul.f32 %v23, 0.2
    %v56 = vmul.f32 %v24, 0.2
    %v57 = vmul.f32 %v25, 0.2
    %v58 = vmul.f32 %v26, 0.2
    %v59 = vmul.f32 %v27, 0.2
    %v60 = vmul.f32 %v28, 0.2
    %v61 = vmul.f32 %v29, 0.2
    %v62 = vmul.f32 %v30, 0.2
    %v63 = vmul.f32 %v31, 0.2
    %v64 = vmul.f32 %v32, 0.2
    %v65 = vmul.f32 %v33, 0.2
    %v66 = vsel %vm34, %v18, %v50
    %v67 = vsel %vm35, %v19, %v51
    %v68 = vsel %vm36, %v20, %v52
    %v69 = vsel %vm37, %v21, %v53
    %v70 = vsel %vm38, %v22, %v54
    %v71 = vsel %vm39, %v23, %v55
    %v72 = vsel %vm40, %v24, %v56
    %v73 = vsel %vm41, %v25, %v57
    %v74 = vsel %vm42, %v26, %v58
    %v75 = vsel %vm43, %v27, %v59
    %v76 = vsel %vm44, %v28, %v60
    %v77 = vsel %vm45, %v29, %v61
    %v78 = vsel %vm46, %v30, %v62
    %v79 = vsel %vm47, %v31, %v63
    %v80 = vsel %vm48, %v32, %v64
    %v81 = vsel %vm49, %v33, %v65
    %v82 = vld [vmem:[%s1] sm:$0xff]
    %v83 = vld [vmem:[%s1 + $0x8] sm:$0xff]
    %v84 = vld [vmem:[%s1 + $0x10] sm:$0xff]
    %v85 = vld [vmem:[%s1 + $0x18] sm:$0xff]
    %v86 = vld [vmem:[%s1 + $0x20] sm:$0xff]
    %v87 = vld [vmem:[%s1 + $0x28] sm:$0xff]
    %v88 = vld [vmem:[%s1 + $0x30] sm:$0xff]
    %v89 = vld [vmem:[%s1 + $0x38] sm:$0xff]
    %vm90 = vcmask 523264
    %v92 = vsel %vm90, %v66, 0
    %v95 = vsel %vm90, %v67, 0
    %v98 = vsel %vm90, %v68, 0
    %v101 = vsel %vm90, %v69, 0
    %v104 = vsel %vm90, %v70, 0
    %v107 = vsel %vm90, %v71, 0
    %v110 = vsel %vm90, %v72, 0
    %v113 = vsel %vm90, %v73, 0
    %v116 = vsel %vm90, %v74, 0
    %v119 = vsel %vm90, %v75, 0
    %v122 = vsel %vm90, %v76, 0
    %v125 = vsel %vm90, %v77, 0
    %v128 = vsel %vm90, %v78, 0
    %v131 = vsel %vm90, %v79, 0
    %v134 = vsel %vm90, %v80, 0
    %v137 = vsel %vm90, %v81, 0
    %139 = vmatprep.subr.mxu0 0.0
    %140 = vmatpush1.msra.mxu0 %v82
    %141 = vmatprep.subr.mxu0 0.0
    %142 = vmatpush1.msra.mxu0 %v83
    %143 = vmatprep.subr.mxu0 0.0
    %144 = vmatpush1.msra.mxu0 %v84
    %145 = vmatprep.subr.mxu0 0.0
    %146 = vmatpush1.msra.mxu0 %v85
    %147 = vmatprep.subr.mxu0 0.0
    %148 = vmatpush1.msra.mxu0 %v86
    %149 = vmatprep.subr.mxu0 0.0
    %150 = vmatpush1.msra.mxu0 %v87
    %151 = vmatprep.subr.mxu0 0.0
    %152 = vmatpush1.msra.mxu0 %v88
    %153 = vmatprep.subr.mxu0 0.0
    %154 = vmatpush1.msra.mxu0 %v89
    %155 = vmatprep.subr.mxu0 0.0
    %156 = vmatpush1.msra.mxu0 0.0
    %157 = vmatprep.subr.mxu0 0.0
    %158 = vmatpush1.msra.mxu0 0.0
    %159 = vmatprep.subr.mxu0 0.0
    %160 = vmatpush1.msra.mxu0 0.0
    %161 = vmatprep.subr.mxu0 0.0
    %162 = vmatpush1.msra.mxu0 0.0
    %163 = vmatprep.subr.mxu0 0.0
    %164 = vmatpush1.msra.mxu0 0.0
    %165 = vmatprep.subr.mxu0 0.0
    %166 = vmatpush1.msra.mxu0 0.0
    %167 = vmatprep.subr.mxu0 0.0
    %168 = vmatpush1.msra.mxu0 0.0
    %169 = vmatprep.subr.mxu0 0.0
    %170 = vmatpush1.msra.mxu0 0.0
    %171 = vmatprep.subr.mxu0 0.0
    %172 = vmatpush1.msra.mxu0 0.0
    %173 = vmatprep.subr.mxu0 0.0
    %174 = vmatpush1.msra.mxu0 0.0
    %175 = vmatprep.subr.mxu0 0.0
    %176 = vmatpush1.msra.mxu0 0.0
    %177 = vmatprep.subr.mxu0 0.0
    %178 = vmatpush1.msra.mxu0 0.0
    %179 = vmatprep.subr.mxu0 0.0
    %180 = vmatpush1.msra.mxu0 0.0
    %181 = vmatprep.subr.mxu0 0.0
    %182 = vmatpush1.msra.mxu0 0.0
    %183 = vmatprep.subr.mxu0 0.0
    %184 = vmatpush1.msra.mxu0 0.0
    %185 = vmatprep.subr.mxu0 0.0
    %186 = vmatpush1.msra.mxu0 0.0
    %187 = vmatprep.subr.mxu0 0.0
    %188 = vmatpush1.msra.mxu0 0.0
    %189 = vmatprep.subr.mxu0 0.0
    %190 = vmatpush1.msra.mxu0 0.0
    %191 = vmatprep.subr.mxu0 0.0
    %192 = vmatpush1.msra.mxu0 0.0
    %193 = vmatprep.subr.mxu0 0.0
    %194 = vmatpush1.msra.mxu0 0.0
    %195 = vmatprep.subr.mxu0 0.0
    %196 = vmatpush1.msra.mxu0 0.0
    %197 = vmatprep.subr.mxu0 0.0
    %198 = vmatpush1.msra.mxu0 0.0
    %199 = vmatprep.subr.mxu0 0.0
    %200 = vmatpush1.msra.mxu0 0.0
    %201 = vmatprep.subr.mxu0 0.0
    %202 = vmatpush1.msra.mxu0 0.0
    %203 = vmatprep.mubr.f32.mxu0 0.0
    %204 = vmatmul.mubr.f32.gmra.mrb[0].mxu0 %v92
    %v205 = vpop.f32.mrb[0].mxu0
    %v206 = vadd.f32 0.0, %v205
    %v207 = vpop.f32.mrb[0].mxu0
    %208 = vmatprep.mubr.f32.mxu0 0.0
    %209 = vmatmul.mubr.f32.gmra.mrb[0].mxu0 %v95
    %v210 = vpop.f32.mrb[0].mxu0
    %v211 = vadd.f32 0.0, %v210
    %v212 = vpop.f32.mrb[0].mxu0
    %213 = vmatprep.mubr.f32.mxu0 0.0
    %214 = vmatmul.mubr.f32.gmra.mrb[0].mxu0 %v98
    %v215 = vpop.f32.mrb[0].mxu0
    %v216 = vadd.f32 0.0, %v215
    %v217 = vpop.f32.mrb[0].mxu0
    %218 = vmatprep.mubr.f32.mxu0 0.0
    %219 = vmatmul.mubr.f32.gmra.mrb[0].mxu0 %v101
    %v220 = vpop.f32.mrb[0].mxu0
    %v221 = vadd.f32 0.0, %v220
    %v222 = vpop.f32.mrb[0].mxu0
    %223 = vmatprep.mubr.f32.mxu0 0.0
    %224 = vmatmul.mubr.f32.gmra.mrb[0].mxu0 %v104
    %v225 = vpop.f32.mrb[0].mxu0
    %v226 = vadd.f32 0.0, %v225
    %v227 = vpop.f32.mrb[0].mxu0
    %228 = vmatprep.mubr.f32.mxu0 0.0
    %229 = vmatmul.mubr.f32.gmra.mrb[0].mxu0 %v107
    %v230 = vpop.f32.mrb[0].mxu0
    %v231 = vadd.f32 0.0, %v230
    %v232 = vpop.f32.mrb[0].mxu0
    %233 = vmatprep.mubr.f32.mxu0 0.0
    %234 = vmatmul.mubr.f32.gmra.mrb[0].mxu0 %v110
    %v235 = vpop.f32.mrb[0].mxu0
    %v236 = vadd.f32 0.0, %v235
    %v237 = vpop.f32.mrb[0].mxu0
    %238 = vmatprep.mubr.f32.mxu0 0.0
    %239 = vmatmul.mubr.f32.gmra.mrb[0].mxu0 %v113
    %v240 = vpop.f32.mrb[0].mxu0
    %v241 = vadd.f32 0.0, %v240
    %v242 = vpop.f32.mrb[0].mxu0
    %243 = vmatprep.mubr.f32.mxu0 0.0
    %244 = vmatmul.mubr.f32.gmra.mrb[0].mxu0 %v116
    %v245 = vpop.f32.mrb[0].mxu0
    %v246 = vadd.f32 0.0, %v245
    %v247 = vpop.f32.mrb[0].mxu0
    %248 = vmatprep.mubr.f32.mxu0 0.0
    %249 = vmatmul.mubr.f32.gmra.mrb[0].mxu0 %v119
    %v250 = vpop.f32.mrb[0].mxu0
    %v251 = vadd.f32 0.0, %v250
    %v252 = vpop.f32.mrb[0].mxu0
    %253 = vmatprep.mubr.f32.mxu0 0.0
    %254 = vmatmul.mubr.f32.gmra.mrb[0].mxu0 %v122
    %v255 = vpop.f32.mrb[0].mxu0
    %v256 = vadd.f32 0.0, %v255
    %v257 = vpop.f32.mrb[0].mxu0
    %258 = vmatprep.mubr.f32.mxu0 0.0
    %259 = vmatmul.mubr.f32.gmra.mrb[0].mxu0 %v125
    %v260 = vpop.f32.mrb[0].mxu0
    %v261 = vadd.f32 0.0, %v260
    %v262 = vpop.f32.mrb[0].mxu0
    %263 = vmatprep.mubr.f32.mxu0 0.0
    %264 = vmatmul.mubr.f32.gmra.mrb[0].mxu0 %v128
    %v265 = vpop.f32.mrb[0].mxu0
    %v266 = vadd.f32 0.0, %v265
    %v267 = vpop.f32.mrb[0].mxu0
    %268 = vmatprep.mubr.f32.mxu0 0.0
    %269 = vmatmul.mubr.f32.gmra.mrb[0].mxu0 %v131
    %v270 = vpop.f32.mrb[0].mxu0
    %v271 = vadd.f32 0.0, %v270
    %v272 = vpop.f32.mrb[0].mxu0
    %273 = vmatprep.mubr.f32.mxu0 0.0
    %274 = vmatmul.mubr.f32.gmra.mrb[0].mxu0 %v134
    %v275 = vpop.f32.mrb[0].mxu0
    %v276 = vadd.f32 0.0, %v275
    %v277 = vpop.f32.mrb[0].mxu0
    %278 = vmatprep.mubr.f32.mxu0 0.0
    %279 = vmatmul.mubr.f32.gmra.mrb[0].mxu0 %v137
    %v280 = vpop.f32.mrb[0].mxu0
    %v281 = vadd.f32 0.0, %v280
    %v282 = vpop.f32.mrb[0].mxu0
    %283 = vdwg.mxu0
    %284 = vmatprep.subr.mxu0 0.0
    %285 = vmatpush1.msra.mxu0 %v206
    %286 = vmatprep.subr.mxu0 0.0
    %287 = vmatpush1.msra.mxu0 %v211
    %288 = vmatprep.subr.mxu0 0.0
    %289 = vmatpush1.msra.mxu0 %v216
    %290 = vmatprep.subr.mxu0 0.0
    %291 = vmatpush1.msra.mxu0 %v221
    %292 = vmatprep.subr.mxu0 0.0
    %293 = vmatpush1.msra.mxu0 %v226
    %294 = vmatprep.subr.mxu0 0.0
    %295 = vmatpush1.msra.mxu0 %v231
    %296 = vmatprep.subr.mxu0 0.0
    %297 = vmatpush1.msra.mxu0 %v236
    %298 = vmatprep.subr.mxu0 0.0
    %299 = vmatpush1.msra.mxu0 %v241
    %300 = vmatprep.subr.mxu0 0.0
    %301 = vmatpush1.msra.mxu0 %v246
    %302 = vmatprep.subr.mxu0 0.0
    %303 = vmatpush1.msra.mxu0 %v251
    %304 = vmatprep.subr.mxu0 0.0
    %305 = vmatpush1.msra.mxu0 %v256
    %306 = vmatprep.subr.mxu0 0.0
    %307 = vmatpush1.msra.mxu0 %v261
    %308 = vmatprep.subr.mxu0 0.0
    %309 = vmatpush1.msra.mxu0 %v266
    %310 = vmatprep.subr.mxu0 0.0
    %311 = vmatpush1.msra.mxu0 %v271
    %312 = vmatprep.subr.mxu0 0.0
    %313 = vmatpush1.msra.mxu0 %v276
    %314 = vmatprep.subr.mxu0 0.0
    %315 = vmatpush1.msra.mxu0 %v281
    %316 = vmatprep.subr.mxu0 0.0
    %317 = vmatpush1.msra.mxu0 0.0
    %318 = vmatprep.subr.mxu0 0.0
    %319 = vmatpush1.msra.mxu0 0.0
    %320 = vmatprep.subr.mxu0 0.0
    %321 = vmatpush1.msra.mxu0 0.0
    %322 = vmatprep.subr.mxu0 0.0
    %323 = vmatpush1.msra.mxu0 0.0
    %324 = vmatprep.subr.mxu0 0.0
    %325 = vmatpush1.msra.mxu0 0.0
    %326 = vmatprep.subr.mxu0 0.0
    %327 = vmatpush1.msra.mxu0 0.0
    %328 = vmatprep.subr.mxu0 0.0
    %329 = vmatpush1.msra.mxu0 0.0
    %330 = vmatprep.subr.mxu0 0.0
    %331 = vmatpush1.msra.mxu0 0.0
    %332 = vmatprep.subr.mxu0 0.0
    %333 = vmatpush1.msra.mxu0 0.0
    %334 = vmatprep.subr.mxu0 0.0
    %335 = vmatpush1.msra.mxu0 0.0
    %336 = vmatprep.subr.mxu0 0.0
    %337 = vmatpush1.msra.mxu0 0.0
    %338 = vmatprep.subr.mxu0 0.0
    %339 = vmatpush1.msra.mxu0 0.0
    %340 = vmatprep.subr.mxu0 0.0
    %341 = vmatpush1.msra.mxu0 0.0
    %342 = vmatprep.subr.mxu0 0.0
    %343 = vmatpush1.msra.mxu0 0.0
    %344 = vmatprep.subr.mxu0 0.0
    %345 = vmatpush1.msra.mxu0 0.0
    %346 = vmatprep.subr.mxu0 0.0
    %347 = vmatpush1.msra.mxu0 0.0
    %348 = vmatprep.mubr.f32.mxu0 0.0
    %349 = vmatmul.mubr.f32.gmra.mrb[0].mxu0 1.0
    %v350 = vpop.f32.mrb[0].mxu0
    %v351 = vadd.f32 0.0, %v350
    %v352 = vpop.f32.mrb[0].mxu0
    %353 = vdwg.mxu0
    %v354 = vmul.f32 %v206, %v206
    %v355 = vmul.f32 %v211, %v211
    %v356 = vmul.f32 %v216, %v216
    %v357 = vmul.f32 %v221, %v221
    %v358 = vmul.f32 %v226, %v226
    %v359 = vmul.f32 %v231, %v231
    %v360 = vmul.f32 %v236, %v236
    %v361 = vmul.f32 %v241, %v241
    %v362 = vmul.f32 %v246, %v246
    %v363 = vmul.f32 %v251, %v251
    %v364 = vmul.f32 %v256, %v256
    %v365 = vmul.f32 %v261, %v261
    %v366 = vmul.f32 %v266, %v266
    %v367 = vmul.f32 %v271, %v271
    %v368 = vmul.f32 %v276, %v276
    %v369 = vmul.f32 %v281, %v281
    %370 = vmatprep.subr.mxu0 0.0
    %371 = vmatpush1.msra.mxu0 %v354
    %372 = vmatprep.subr.mxu0 0.0
    %373 = vmatpush1.msra.mxu0 %v355
    %374 = vmatprep.subr.mxu0 0.0
    %375 = vmatpush1.msra.mxu0 %v356
    %376 = vmatprep.subr.mxu0 0.0
    %377 = vmatpush1.msra.mxu0 %v357
    %378 = vmatprep.subr.mxu0 0.0
    %379 = vmatpush1.msra.mxu0 %v358
    %380 = vmatprep.subr.mxu0 0.0
    %381 = vmatpush1.msra.mxu0 %v359
    %382 = vmatprep.subr.mxu0 0.0
    %383 = vmatpush1.msra.mxu0 %v360
    %384 = vmatprep.subr.mxu0 0.0
    %385 = vmatpush1.msra.mxu0 %v361
    %386 = vmatprep.subr.mxu0 0.0
    %387 = vmatpush1.msra.mxu0 %v362
    %388 = vmatprep.subr.mxu0 0.0
    %389 = vmatpush1.msra.mxu0 %v363
    %390 = vmatprep.subr.mxu0 0.0
    %391 = vmatpush1.msra.mxu0 %v364
    %392 = vmatprep.subr.mxu0 0.0
    %393 = vmatpush1.msra.mxu0 %v365
    %394 = vmatprep.subr.mxu0 0.0
    %395 = vmatpush1.msra.mxu0 %v366
    %396 = vmatprep.subr.mxu0 0.0
    %397 = vmatpush1.msra.mxu0 %v367
    %398 = vmatprep.subr.mxu0 0.0
    %399 = vmatpush1.msra.mxu0 %v368
    %400 = vmatprep.subr.mxu0 0.0
    %401 = vmatpush1.msra.mxu0 %v369
    %402 = vmatprep.subr.mxu0 0.0
    %403 = vmatpush1.msra.mxu0 0.0
    %404 = vmatprep.subr.mxu0 0.0
    %405 = vmatpush1.msra.mxu0 0.0
    %406 = vmatprep.subr.mxu0 0.0
    %407 = vmatpush1.msra.mxu0 0.0
    %408 = vmatprep.subr.mxu0 0.0
    %409 = vmatpush1.msra.mxu0 0.0
    %410 = vmatprep.subr.mxu0 0.0
    %411 = vmatpush1.msra.mxu0 0.0
    %412 = vmatprep.subr.mxu0 0.0
    %413 = vmatpush1.msra.mxu0 0.0
    %414 = vmatprep.subr.mxu0 0.0
    %415 = vmatpush1.msra.mxu0 0.0
    %416 = vmatprep.subr.mxu0 0.0
    %417 = vmatpush1.msra.mxu0 0.0
    %418 = vmatprep.subr.mxu0 0.0
    %419 = vmatpush1.msra.mxu0 0.0
    %420 = vmatprep.subr.mxu0 0.0
    %421 = vmatpush1.msra.mxu0 0.0
    %422 = vmatprep.subr.mxu0 0.0
    %423 = vmatpush1.msra.mxu0 0.0
    %424 = vmatprep.subr.mxu0 0.0
    %425 = vmatpush1.msra.mxu0 0.0
    %426 = vmatprep.subr.mxu0 0.0
    %427 = vmatpush1.msra.mxu0 0.0
    %428 = vmatprep.subr.mxu0 0.0
    %429 = vmatpush1.msra.mxu0 0.0
    %430 = vmatprep.subr.mxu0 0.0
    %431 = vmatpush1.msra.mxu0 0.0
    %432 = vmatprep.subr.mxu0 0.0
    %433 = vmatpush1.msra.mxu0 0.0
    %434 = vmatprep.mubr.f32.mxu0 0.0
    %435 = vmatmul.mubr.f32.gmra.mrb[0].mxu0 1.0
    %v436 = vpop.f32.mrb[0].mxu0
    %v437 = vadd.f32 0.0, %v436
    %v438 = vpop.f32.mrb[0].mxu0
    %439 = vdwg.mxu0
    %v440 = vmul.f32 %v351, 0.0078125
    %v441 = vmul.f32 %v437, 0.0078125
    %v442 = vmul.f32 %v440, %v440
    %v443 = vsub.f32 %v441, %v442
    %v444 = vmax.f32 %v443, 0.0
    %v445 = vadd.f32 %v444, 1e-05
    %v446 = vrsqrt.pop %v445
    %v447 = vld [vmem:[%s2] sm:$0x1]
    %v448 = vmul.f32 %v447, %v446
    %v449 = vld [vmem:[%s3] sm:$0x1]
    %v450 = vmul.f32 %v440, %v448
    %v451 = vsub.f32 %v449, %v450
    %v453 = vlaneseq
    %v454 = vshrl.u32 %v453, 7
    %v455 = vsub.s32 0, %v454
    %v456 = vrot.slane %v448, %v455
    %v458 = vmul.f32 %v206, %v456
    %v459 = vmul.f32 %v211, %v456
    %v460 = vmul.f32 %v216, %v456
    %v461 = vmul.f32 %v221, %v456
    %v462 = vmul.f32 %v226, %v456
    %v463 = vmul.f32 %v231, %v456
    %v464 = vmul.f32 %v236, %v456
    %v465 = vmul.f32 %v241, %v456
    %v466 = vmul.f32 %v246, %v456
    %v467 = vmul.f32 %v251, %v456
    %v468 = vmul.f32 %v256, %v456
    %v469 = vmul.f32 %v261, %v456
    %v470 = vmul.f32 %v266, %v456
    %v471 = vmul.f32 %v271, %v456
    %v472 = vmul.f32 %v276, %v456
    %v473 = vmul.f32 %v281, %v456
    %v475 = vlaneseq
    %v476 = vshrl.u32 %v475, 7
    %v477 = vsub.s32 0, %v476
    %v478 = vrot.slane %v451, %v477
    %v480 = vadd.f32 %v458, %v478
    %v481 = vadd.f32 %v459, %v478
    %v482 = vadd.f32 %v460, %v478
    %v483 = vadd.f32 %v461, %v478
    %v484 = vadd.f32 %v462, %v478
    %v485 = vadd.f32 %v463, %v478
    %v486 = vadd.f32 %v464, %v478
    %v487 = vadd.f32 %v465, %v478
    %v488 = vadd.f32 %v466, %v478
    %v489 = vadd.f32 %v467, %v478
    %v490 = vadd.f32 %v468, %v478
    %v491 = vadd.f32 %v469, %v478
    %v492 = vadd.f32 %v470, %v478
    %v493 = vadd.f32 %v471, %v478
    %v494 = vadd.f32 %v472, %v478
    %v495 = vadd.f32 %v473, %v478
    %496 = vst [vmem:[#allocation2] sm:$0xff] %v480
    %497 = vst [vmem:[#allocation2 + $0x8] sm:$0xff] %v481
    %498 = vst [vmem:[#allocation2 + $0x10] sm:$0xff] %v482
    %499 = vst [vmem:[#allocation2 + $0x18] sm:$0xff] %v483
    %500 = vst [vmem:[#allocation2 + $0x20] sm:$0xff] %v484
    %501 = vst [vmem:[#allocation2 + $0x28] sm:$0xff] %v485
    %502 = vst [vmem:[#allocation2 + $0x30] sm:$0xff] %v486
    %503 = vst [vmem:[#allocation2 + $0x38] sm:$0xff] %v487
    %504 = vst [vmem:[#allocation2 + $0x40] sm:$0xff] %v488
    %505 = vst [vmem:[#allocation2 + $0x48] sm:$0xff] %v489
    %506 = vst [vmem:[#allocation2 + $0x50] sm:$0xff] %v490
    %507 = vst [vmem:[#allocation2 + $0x58] sm:$0xff] %v491
    %508 = vst [vmem:[#allocation2 + $0x60] sm:$0xff] %v492
    %509 = vst [vmem:[#allocation2 + $0x68] sm:$0xff] %v493
    %510 = vst [vmem:[#allocation2 + $0x70] sm:$0xff] %v494
    %511 = vst [vmem:[#allocation2 + $0x78] sm:$0xff] %v495
    // Predicated region
    $region18: #{tpu_custom_call.1} parent=1 // pred_check
      _
    $region19: #{tpu_custom_call.1} parent=1 // pred_check_branch
      %513 = sbr.rel (0) target = $region21
    $region20: #{tpu_custom_call.1} parent=1 // pred_region
      %s515 = ssub.s32 2048, 2048
      %516 = vsyncadd [#allocation3], %s515
      %s517 = sshll.u32 [#allocation2], 4
      %s518 = int_to_ptr.vmem [resolvable:$true] %s517
      %523 = dma.vmem_to_hbm [thread:$0]  %s518, 2048, %s4, [#allocation3], 128, 128, 8
    $region21: #{tpu_custom_call.1} parent=1 // pred_fallthru
      _
    // Predicated region
    $region22: #{tpu_custom_call.1} parent=1 // pred_check
      _
    $region23: #{tpu_custom_call.1} parent=1 // pred_check_branch
      %525 = sbr.rel (0) target = $region25
    $region24: #{tpu_custom_call.1} parent=1 // pred_region
      %526 = dma.done [#allocation3], 2048
    $region25: #{tpu_custom_call.1} parent=1 // pred_fallthru
      _
    %527 = vsyncpa [#allocation3], 1

</llo_original>
